<compile_context>
chip_gen: v5e
topology: v5e:2x2
jax: 0.10.0
libtpu: 0.0.40
codegen_flags: <defaults>
</compile_context>

<pallas_src>
import jax
import jax.numpy as jnp
from jax.experimental import pallas as pl
from jax.experimental.pallas import tpu as pltpu


def _round_up(x, m):
    return ((x + m - 1) // m) * m


def _cdiv(a, b):
    return (a + b - 1) // b


def _edge_decoder_kernel(zp_ref, zl_ref, w_ref, b_ref, o_ref, x_ref):
    # zp_ref, zl_ref: (TB, W) packed embedding tiles, W = E*D (E edges per row)
    # w_ref:          (W, E)  block-diagonal selector: w_ref[e*D + d, e] = weight[d]
    # b_ref:          (1, 1)  bias scalar in SMEM
    # o_ref:          (TB, E) per-edge logits (lane-dense when E == 128)
    # x_ref:          (TB, W) f32 VMEM scratch for the elementwise product
    x_ref[...] = zp_ref[...].astype(jnp.float32) * zl_ref[...].astype(jnp.float32)
    y = jnp.dot(x_ref[...], w_ref[...], preferred_element_type=jnp.float32)
    o_ref[...] = (y + b_ref[0, 0]).astype(o_ref.dtype)


def edge_decoder(z_paper, z_label, weight, bias, *,
                 block_bytes=2 << 20, input_buffer_count=2):
    """((z_paper * z_label) @ weight + bias).squeeze(-1) -> [N].

    z_paper, z_label: [N, D] (f32 or bf16); weight: [D, 1]; bias: scalar.
    """
    N, D = z_paper.shape
    assert z_label.shape == (N, D)
    assert weight.shape == (D, 1)
    f32 = jnp.float32
    in_dtype = jnp.dtype(z_paper.dtype)
    out_dtype = z_paper.dtype
    itemsize = in_dtype.itemsize
    # Sublane quantum of the input dtype: (8,128) f32, (16,128) bf16, (32,128) int8/fp8.
    sub = {4: 8, 2: 16, 1: 32}.get(itemsize, 8)

    # E consecutive edges packed into one (E*D)-lane row.  E = 128 makes every
    # input AND output block lane-dense with no in-kernel relayout; fall back to
    # E = 1 (plain [N, D] blocks) for very wide embeddings where the selector
    # would get large.
    E = 128 if D <= 256 else 1
    W = E * D

    # Pad only to the packing granularity E (never to a full tile).  When
    # N % E == 0 this path is completely copy-free (row-major reshape).
    # TODO(synk): ragged N still costs one pad pass over the inputs; a manual-DMA
    # tail path (pl.ANY + make_async_copy) could remove it.
    N_pad = _round_up(N, E)
    if N_pad != N:
        pad = ((0, N_pad - N), (0, 0))
        z_paper = jnp.pad(z_paper, pad)
        z_label = jnp.pad(z_label, pad)
    R = N_pad // E
    zp = z_paper.reshape(R, W)
    zl = z_label.reshape(R, W)

    # Row tile: ~block_bytes per input block, rounded to the sublane quantum, and
    # capped so mid-sized inputs still produce >= 2 grid steps (v7x megacore).
    tb_budget = max(sub, (block_bytes // (W * itemsize)) // sub * sub)
    if R <= sub:
        tb = R                                    # tiny input: one full-extent block
    else:
        tb = min(tb_budget, max(sub, _round_up(_cdiv(R, 2), sub)))
    grid = (_cdiv(R, tb),)                        # partial last block, no round-up

    # Block-diagonal selector folding Linear(D, 1) into the packed layout.
    w = weight[:, 0].astype(f32)
    if E > 1:
        w_sel = (jnp.eye(E, dtype=f32)[:, None, :] * w[None, :, None]).reshape(W, E)
    else:
        w_sel = w.reshape(D, 1)
    bias_arr = jnp.asarray(bias, f32).reshape(1, 1)

    # VMEM budget from the actual footprint (inputs double/N-buffered, output
    # double-buffered, resident selector, f32 product scratch) + margin for
    # Mosaic-internal scratch.
    vmem_bytes = (2 * input_buffer_count * tb * W * itemsize
                  + 2 * tb * E * 4
                  + 2 * W * E * 4
                  + tb * W * 4
                  + (8 << 20))

    in_kwargs = {}
    if input_buffer_count != 2:   # e.g. Buffered(3) on v6e if a trace shows exposed DMA
        in_kwargs = dict(pipeline_mode=pl.Buffered(input_buffer_count))
    in_spec = pl.BlockSpec((tb, W), lambda i: (i, 0), **in_kwargs)

    out2 = pl.pallas_call(
        _edge_decoder_kernel,
        out_shape=jax.ShapeDtypeStruct((R, E), out_dtype),
        grid_spec=pltpu.PrefetchScalarGridSpec(
            num_scalar_prefetch=0,
            grid=grid,
            in_specs=[
                in_spec,                                              # z_paper tile
                in_spec,                                              # z_label tile
                pl.BlockSpec((W, E), lambda i: (0, 0)),               # selector (resident)
                pl.BlockSpec(memory_space=pltpu.MemorySpace.SMEM),    # bias scalar
            ],
            out_specs=pl.BlockSpec((tb, E), lambda i: (i, 0)),
            scratch_shapes=[pltpu.VMEM((tb, W), jnp.float32)],
        ),
        compiler_params=pltpu.CompilerParams(
            dimension_semantics=("parallel",),    # shard rows across v7x TCs
            vmem_limit_bytes=int(vmem_bytes)),
    )(zp, zl, w_sel, bias_arr)

    # (R, E) row-major == global edge order; drop the < E padded edges.
    return out2.reshape(-1)[:N]


def edge_decoder_ref(z_paper, z_label, weight, bias):
    x = z_paper.astype(jnp.float32) * z_label.astype(jnp.float32)
    w = weight[:, 0].astype(jnp.float32)
    return jnp.sum(x * w[None, :], axis=-1) + jnp.asarray(bias, jnp.float32)


if __name__ == "__main__":
    D = 32  # embedding_size
    key = jax.random.PRNGKey(0)
    k_w, k_b = jax.random.split(key)

    # Deterministic Linear(D, 1) params (PyTorch-style uniform bound).
    bound = 1.0 / (D ** 0.5)
    weight = jax.random.uniform(k_w, (D, 1), jnp.float32, minval=-bound, maxval=bound)
    bias = jax.random.uniform(k_b, (), jnp.float32, minval=-bound, maxval=bound)
    # Round values to bf16-representable f32 so the numerical check is
    # independent of the backend's default matmul precision.
    weight = weight.astype(jnp.bfloat16).astype(jnp.float32)

    run = jax.jit(edge_decoder)

    def check(n, dtype, tol):
        k1, k2 = jax.random.split(jax.random.fold_in(key, n))
        zp = jax.random.normal(k1, (n, D), jnp.float32)
        zl = jax.random.normal(k2, (n, D), jnp.float32)
        zp = zp.astype(jnp.bfloat16).astype(jnp.float32).astype(dtype)
        zl = zl.astype(jnp.bfloat16).astype(jnp.float32).astype(dtype)
        out = jax.block_until_ready(run(zp, zl, weight, bias))
        ref = edge_decoder_ref(zp, zl, weight, bias)
        assert out.shape == (n,), (n, out.shape)
        assert jnp.allclose(out.astype(jnp.float32), ref, atol=tol, rtol=tol), (n, str(dtype))

    check(19, jnp.float32, 1e-4)     # ragged tiny N: pad-to-128 path, single full-extent block
    check(4608, jnp.float32, 1e-4)   # N % 128 == 0: copy-free path, 2 parallel grid steps
    check(300, jnp.bfloat16, 2e-2)   # bf16 inputs/outputs (halved HBM traffic)
    print("KERNEL_OK")
</pallas_src>

<mosaic_0001>
module attributes {stable_mosaic.version = 11 : i64} {
  func.func @_edge_decoder_kernel(%arg0: i32, %arg1: memref<1x4096xf32, #tpu.memory_space<vmem>>, %arg2: memref<1x4096xf32, #tpu.memory_space<vmem>>, %arg3: memref<4096x128xf32, #tpu.memory_space<vmem>>, %arg4: memref<1x1xf32, #tpu.memory_space<smem>>, %arg5: memref<1x128xf32, #tpu.memory_space<vmem>>, %arg6: memref<1x4096xf32, #tpu.memory_space<vmem>>) attributes {dimension_semantics = [#tpu.dimension_semantics<parallel>], iteration_bounds = array<i64: 1>, scalar_prefetch = 0 : i64, scratch_operands = 1 : i64, tpu.core_type = #tpu.core_type<tc>, window_params = [{transform_indices = @transform_0, window_bounds = array<i64: 1, 4096>}, {transform_indices = @transform_1, window_bounds = array<i64: 1, 4096>}, {pipeline_mode = #tpu.pipeline_mode<synchronous>, transform_indices = @transform_2, window_bounds = array<i64: 4096, 128>}, {transform_indices = @transform_3, window_bounds = array<i64: 1, 1>}, {transform_indices = @transform_4, window_bounds = array<i64: 1, 128>}]} {
    %c0 = arith.constant 0 : index
    %c0_0 = arith.constant 0 : index
    %0 = vector.load %arg1[%c0, %c0_0] : memref<1x4096xf32, #tpu.memory_space<vmem>>, vector<1x4096xf32>
    %c0_1 = arith.constant 0 : index
    %c0_2 = arith.constant 0 : index
    %1 = vector.load %arg2[%c0_1, %c0_2] : memref<1x4096xf32, #tpu.memory_space<vmem>>, vector<1x4096xf32>
    %2 = arith.mulf %0, %1 : vector<1x4096xf32>
    %c0_3 = arith.constant 0 : index
    %c0_4 = arith.constant 0 : index
    %3 = vector.load %arg6[%c0_3, %c0_4] : memref<1x4096xf32, #tpu.memory_space<vmem>>, vector<1x4096xf32>
    tpu.vector_store %arg6[%c0_3, %c0_4], %2 {strides = array<i32>} : memref<1x4096xf32, #tpu.memory_space<vmem>>, vector<1x4096xf32>,
    %c0_5 = arith.constant 0 : index
    %c0_6 = arith.constant 0 : index
    %4 = vector.load %arg6[%c0_5, %c0_6] : memref<1x4096xf32, #tpu.memory_space<vmem>>, vector<1x4096xf32>
    %c0_7 = arith.constant 0 : index
    %c0_8 = arith.constant 0 : index
    %5 = vector.load %arg3[%c0_7, %c0_8] : memref<4096x128xf32, #tpu.memory_space<vmem>>, vector<4096x128xf32>
    %cst = arith.constant dense<0.000000e+00> : vector<1x128xf32>
    %6 = tpu.matmul %4, %5, %cst {dimension_numbers = #tpu.dot_dimension_numbers<[1], [0], [0], [1], [0, 0, 1, 1], [], []>} : vector<1x4096xf32>, vector<4096x128xf32>, vector<1x128xf32> -> vector<1x128xf32>
    %c0_9 = arith.constant 0 : index
    %c0_10 = arith.constant 0 : index
    %7 = memref.load %arg4[%c0_9, %c0_10] : memref<1x1xf32, #tpu.memory_space<smem>>
    %8 = vector.broadcast %7 : f32 to vector<1x128xf32>
    %9 = arith.addf %6, %8 : vector<1x128xf32>
    %c0_11 = arith.constant 0 : index
    %c0_12 = arith.constant 0 : index
    %10 = vector.load %arg5[%c0_11, %c0_12] : memref<1x128xf32, #tpu.memory_space<vmem>>, vector<1x128xf32>
    tpu.vector_store %arg5[%c0_11, %c0_12], %9 {strides = array<i32>} : memref<1x128xf32, #tpu.memory_space<vmem>>, vector<1x128xf32>,
    return
  }
  func.func @transform_0(%arg0: i32) -> (i32, i32) {
    %c0_i32 = arith.constant 0 : i32
    %c0_i32_0 = arith.constant 0 : i32
    return %arg0, %c0_i32 : i32, i32
  }
  func.func @transform_1(%arg0: i32) -> (i32, i32) {
    %c0_i32 = arith.constant 0 : i32
    %c0_i32_0 = arith.constant 0 : i32
    return %arg0, %c0_i32 : i32, i32
  }
  func.func @transform_2(%arg0: i32) -> (i32, i32) {
    %c0_i32 = arith.constant 0 : i32
    %c0_i32_0 = arith.constant 0 : i32
    %c0_i32_1 = arith.constant 0 : i32
    return %c0_i32, %c0_i32_0 : i32, i32
  }
  func.func @transform_3(%arg0: i32) -> (i32, i32) {
    %c0_i32 = arith.constant 0 : i32
    %c0_i32_0 = arith.constant 0 : i32
    %c0_i32_1 = arith.constant 0 : i32
    return %c0_i32, %c0_i32_0 : i32, i32
  }
  func.func @transform_4(%arg0: i32) -> (i32, i32) {
    %c0_i32 = arith.constant 0 : i32
    %c0_i32_0 = arith.constant 0 : i32
    return %arg0, %c0_i32 : i32, i32
  }
}

</mosaic_0001>

<llo_original>
// kernel: edge_decoder.1
$region0: #{edge_decoder.1}
  #allocation0 [shape = 'u32[]', space=smem, size = 0x4, offset = 0x4, fixed_abs, tag = 'smem constant byte address 0x4 - core index']
  #allocation1 [shape = 'u32[72,128]{1,0:T(1,128)}', space=vmem, size = 0x9000, scoped, tag = 'internal scratch']
  #allocation2 [shape = 'f32[1,4096]{1,0:T(1,128)}', space=vmem, size = 0x4000, scoped, tag = 'scratch operand']
  #allocation3 [shape = 'f32[1,1]{1,0:T(1,128)S(6)}', space=smem, size = 0x200, scoped, tag = 'scoped memory for edge_decoder.1']
  %s0 = inlined_call_operand.vmem [shape: f32[1,4096], index: 0, kind: input, shape index: {}]
  %s1 = inlined_call_operand.vmem [shape: f32[1,4096], index: 1, kind: input, shape index: {}]
  %s2 = inlined_call_operand.vmem [shape: f32[4096,128], index: 2, kind: input, shape index: {}]
  %s3 = inlined_call_operand.<no memory space> [shape: f32[1,1], index: 3, kind: input, shape index: {}]
  %s4 = inlined_call_operand.vmem [shape: f32[1,128], index: 4, kind: output, shape index: {}]
  %s5 = sld [smem:[#allocation0]]
  $region26: #{edge_decoder.1} parent=0
    _
  %s7 = ssub.s32 1, %s5
  %s8 = scalar_select 0, %s7, %s5
  %9 = sst [smem:[#allocation3]] %s3
  // Predicated region
  $region2: #{edge_decoder.1} parent=0 // pred_check
    _
  $region3: #{edge_decoder.1} parent=0 // pred_check_branch
    %11 = sbr.rel (0) target = $region5
  $region4: #{edge_decoder.1} parent=0 // pred_region
    _
  $region5: #{edge_decoder.1} parent=0 // pred_fallthru
    _
  // Predicated region
  $region6: #{edge_decoder.1} parent=0 // pred_check
    _
  $region7: #{edge_decoder.1} parent=0 // pred_check_branch
    %13 = sbr.rel (0) target = $region9
  $region8: #{edge_decoder.1} parent=0 // pred_region
    _
  $region9: #{edge_decoder.1} parent=0 // pred_fallthru
    _
  // Predicated region
  $region10: #{edge_decoder.1} parent=0 // pred_check
    _
  $region11: #{edge_decoder.1} parent=0 // pred_check_branch
    %15 = sbr.rel (0) target = $region13
  $region12: #{edge_decoder.1} parent=0 // pred_region
    _
  $region13: #{edge_decoder.1} parent=0 // pred_fallthru
    _
  // Predicated region
  $region14: #{edge_decoder.1} parent=0 // pred_check
    _
  $region15: #{edge_decoder.1} parent=0 // pred_check_branch
    %17 = sbr.rel (0) target = $region17
  $region16: #{edge_decoder.1} parent=0 // pred_region
    _
  $region17: #{edge_decoder.1} parent=0 // pred_fallthru
    _
  %v18 = vld [vmem:[%s0] sm:$0xff]
  %v19 = vld [vmem:[%s0 + $0x8] sm:$0xff]
  %v20 = vld [vmem:[%s0 + $0x10] sm:$0xff]
  %v21 = vld [vmem:[%s0 + $0x18] sm:$0xff]
  %v22 = vld [vmem:[%s1] sm:$0xff]
  %v23 = vld [vmem:[%s1 + $0x8] sm:$0xff]
  %v24 = vld [vmem:[%s1 + $0x10] sm:$0xff]
  %v25 = vld [vmem:[%s1 + $0x18] sm:$0xff]
  %v26 = vmul.f32 %v18, %v22
  %v27 = vmul.f32 %v19, %v23
  %v28 = vmul.f32 %v20, %v24
  %v29 = vmul.f32 %v21, %v25
  %30 = vst [vmem:[#allocation2] sm:$0xff] %v26
  %31 = vst [vmem:[#allocation2 + $0x8] sm:$0xff] %v27
  %32 = vst [vmem:[#allocation2 + $0x10] sm:$0xff] %v28
  %33 = vst [vmem:[#allocation2 + $0x18] sm:$0xff] %v29
  %v34 = vld [vmem:[#allocation2] sm:$0xff]
  %v35 = vld [vmem:[#allocation2 + $0x8] sm:$0xff]
  %v36 = vld [vmem:[#allocation2 + $0x10] sm:$0xff]
  %v37 = vld [vmem:[#allocation2 + $0x18] sm:$0xff]
  %v38 = vld [vmem:[%s2] sm:$0xff]
  %v39 = vld [vmem:[%s2 + $0x8] sm:$0xff]
  %v40 = vld [vmem:[%s2 + $0x10] sm:$0xff]
  %v41 = vld [vmem:[%s2 + $0x18] sm:$0xff]
  %v42 = vld [vmem:[%s2 + $0x20] sm:$0xff]
  %v43 = vld [vmem:[%s2 + $0x28] sm:$0xff]
  %v44 = vld [vmem:[%s2 + $0x30] sm:$0xff]
  %v45 = vld [vmem:[%s2 + $0x38] sm:$0xff]
  %v46 = vld [vmem:[%s2 + $0x40] sm:$0xff]
  %v47 = vld [vmem:[%s2 + $0x48] sm:$0xff]
  %v48 = vld [vmem:[%s2 + $0x50] sm:$0xff]
  %v49 = vld [vmem:[%s2 + $0x58] sm:$0xff]
  %v50 = vld [vmem:[%s2 + $0x60] sm:$0xff]
  %v51 = vld [vmem:[%s2 + $0x68] sm:$0xff]
  %v52 = vld [vmem:[%s2 + $0x70] sm:$0xff]
  %v53 = vld [vmem:[%s2 + $0x78] sm:$0xff]
  %v54 = vld [vmem:[%s2 + $0x80] sm:$0xff]
  %v55 = vld [vmem:[%s2 + $0x88] sm:$0xff]
  %v56 = vld [vmem:[%s2 + $0x90] sm:$0xff]
  %v57 = vld [vmem:[%s2 + $0x98] sm:$0xff]
  %v58 = vld [vmem:[%s2 + $0xa0] sm:$0xff]
  %v59 = vld [vmem:[%s2 + $0xa8] sm:$0xff]
  %v60 = vld [vmem:[%s2 + $0xb0] sm:$0xff]
  %v61 = vld [vmem:[%s2 + $0xb8] sm:$0xff]
  %v62 = vld [vmem:[%s2 + $0xc0] sm:$0xff]
  %v63 = vld [vmem:[%s2 + $0xc8] sm:$0xff]
  %v64 = vld [vmem:[%s2 + $0xd0] sm:$0xff]
  %v65 = vld [vmem:[%s2 + $0xd8] sm:$0xff]
  %v66 = vld [vmem:[%s2 + $0xe0] sm:$0xff]
  %v67 = vld [vmem:[%s2 + $0xe8] sm:$0xff]
  %v68 = vld [vmem:[%s2 + $0xf0] sm:$0xff]
  %v69 = vld [vmem:[%s2 + $0xf8] sm:$0xff]
  %v70 = vld [vmem:[%s2 + $0x100] sm:$0xff]
  %v71 = vld [vmem:[%s2 + $0x108] sm:$0xff]
  %v72 = vld [vmem:[%s2 + $0x110] sm:$0xff]
  %v73 = vld [vmem:[%s2 + $0x118] sm:$0xff]
  %v74 = vld [vmem:[%s2 + $0x120] sm:$0xff]
  %v75 = vld [vmem:[%s2 + $0x128] sm:$0xff]
  %v76 = vld [vmem:[%s2 + $0x130] sm:$0xff]
  %v77 = vld [vmem:[%s2 + $0x138] sm:$0xff]
  %v78 = vld [vmem:[%s2 + $0x140] sm:$0xff]
  %v79 = vld [vmem:[%s2 + $0x148] sm:$0xff]
  %v80 = vld [vmem:[%s2 + $0x150] sm:$0xff]
  %v81 = vld [vmem:[%s2 + $0x158] sm:$0xff]
  %v82 = vld [vmem:[%s2 + $0x160] sm:$0xff]
  %v83 = vld [vmem:[%s2 + $0x168] sm:$0xff]
  %v84 = vld [vmem:[%s2 + $0x170] sm:$0xff]
  %v85 = vld [vmem:[%s2 + $0x178] sm:$0xff]
  %v86 = vld [vmem:[%s2 + $0x180] sm:$0xff]
  %v87 = vld [vmem:[%s2 + $0x188] sm:$0xff]
  %v88 = vld [vmem:[%s2 + $0x190] sm:$0xff]
  %v89 = vld [vmem:[%s2 + $0x198] sm:$0xff]
  %v90 = vld [vmem:[%s2 + $0x1a0] sm:$0xff]
  %v91 = vld [vmem:[%s2 + $0x1a8] sm:$0xff]
  %v92 = vld [vmem:[%s2 + $0x1b0] sm:$0xff]
  %v93 = vld [vmem:[%s2 + $0x1b8] sm:$0xff]
  %v94 = vld [vmem:[%s2 + $0x1c0] sm:$0xff]
  %v95 = vld [vmem:[%s2 + $0x1c8] sm:$0xff]
  %v96 = vld [vmem:[%s2 + $0x1d0] sm:$0xff]
  %v97 = vld [vmem:[%s2 + $0x1d8] sm:$0xff]
  %v98 = vld [vmem:[%s2 + $0x1e0] sm:$0xff]
  %v99 = vld [vmem:[%s2 + $0x1e8] sm:$0xff]
  %v100 = vld [vmem:[%s2 + $0x1f0] sm:$0xff]
  %v101 = vld [vmem:[%s2 + $0x1f8] sm:$0xff]
  %v102 = vld [vmem:[%s2 + $0x200] sm:$0xff]
  %v103 = vld [vmem:[%s2 + $0x208] sm:$0xff]
  %v104 = vld [vmem:[%s2 + $0x210] sm:$0xff]
  %v105 = vld [vmem:[%s2 + $0x218] sm:$0xff]
  %v106 = vld [vmem:[%s2 + $0x220] sm:$0xff]
  %v107 = vld [vmem:[%s2 + $0x228] sm:$0xff]
  %v108 = vld [vmem:[%s2 + $0x230] sm:$0xff]
  %v109 = vld [vmem:[%s2 + $0x238] sm:$0xff]
  %v110 = vld [vmem:[%s2 + $0x240] sm:$0xff]
  %v111 = vld [vmem:[%s2 + $0x248] sm:$0xff]
  %v112 = vld [vmem:[%s2 + $0x250] sm:$0xff]
  %v113 = vld [vmem:[%s2 + $0x258] sm:$0xff]
  %v114 = vld [vmem:[%s2 + $0x260] sm:$0xff]
  %v115 = vld [vmem:[%s2 + $0x268] sm:$0xff]
  %v116 = vld [vmem:[%s2 + $0x270] sm:$0xff]
  %v117 = vld [vmem:[%s2 + $0x278] sm:$0xff]
  %v118 = vld [vmem:[%s2 + $0x280] sm:$0xff]
  %v119 = vld [vmem:[%s2 + $0x288] sm:$0xff]
  %v120 = vld [vmem:[%s2 + $0x290] sm:$0xff]
  %v121 = vld [vmem:[%s2 + $0x298] sm:$0xff]
  %v122 = vld [vmem:[%s2 + $0x2a0] sm:$0xff]
  %v123 = vld [vmem:[%s2 + $0x2a8] sm:$0xff]
  %v124 = vld [vmem:[%s2 + $0x2b0] sm:$0xff]
  %v125 = vld [vmem:[%s2 + $0x2b8] sm:$0xff]
  %v126 = vld [vmem:[%s2 + $0x2c0] sm:$0xff]
  %v127 = vld [vmem:[%s2 + $0x2c8] sm:$0xff]
  %v128 = vld [vmem:[%s2 + $0x2d0] sm:$0xff]
  %v129 = vld [vmem:[%s2 + $0x2d8] sm:$0xff]
  %v130 = vld [vmem:[%s2 + $0x2e0] sm:$0xff]
  %v131 = vld [vmem:[%s2 + $0x2e8] sm:$0xff]
  %v132 = vld [vmem:[%s2 + $0x2f0] sm:$0xff]
  %v133 = vld [vmem:[%s2 + $0x2f8] sm:$0xff]
  %v134 = vld [vmem:[%s2 + $0x300] sm:$0xff]
  %v135 = vld [vmem:[%s2 + $0x308] sm:$0xff]
  %v136 = vld [vmem:[%s2 + $0x310] sm:$0xff]
  %v137 = vld [vmem:[%s2 + $0x318] sm:$0xff]
  %v138 = vld [vmem:[%s2 + $0x320] sm:$0xff]
  %v139 = vld [vmem:[%s2 + $0x328] sm:$0xff]
  %v140 = vld [vmem:[%s2 + $0x330] sm:$0xff]
  %v141 = vld [vmem:[%s2 + $0x338] sm:$0xff]
  %v142 = vld [vmem:[%s2 + $0x340] sm:$0xff]
  %v143 = vld [vmem:[%s2 + $0x348] sm:$0xff]
  %v144 = vld [vmem:[%s2 + $0x350] sm:$0xff]
  %v145 = vld [vmem:[%s2 + $0x358] sm:$0xff]
  %v146 = vld [vmem:[%s2 + $0x360] sm:$0xff]
  %v147 = vld [vmem:[%s2 + $0x368] sm:$0xff]
  %v148 = vld [vmem:[%s2 + $0x370] sm:$0xff]
  %v149 = vld [vmem:[%s2 + $0x378] sm:$0xff]
  %v150 = vld [vmem:[%s2 + $0x380] sm:$0xff]
  %v151 = vld [vmem:[%s2 + $0x388] sm:$0xff]
  %v152 = vld [vmem:[%s2 + $0x390] sm:$0xff]
  %v153 = vld [vmem:[%s2 + $0x398] sm:$0xff]
  %v154 = vld [vmem:[%s2 + $0x3a0] sm:$0xff]
  %v155 = vld [vmem:[%s2 + $0x3a8] sm:$0xff]
  %v156 = vld [vmem:[%s2 + $0x3b0] sm:$0xff]
  %v157 = vld [vmem:[%s2 + $0x3b8] sm:$0xff]
  %v158 = vld [vmem:[%s2 + $0x3c0] sm:$0xff]
  %v159 = vld [vmem:[%s2 + $0x3c8] sm:$0xff]
  %v160 = vld [vmem:[%s2 + $0x3d0] sm:$0xff]
  %v161 = vld [vmem:[%s2 + $0x3d8] sm:$0xff]
  %v162 = vld [vmem:[%s2 + $0x3e0] sm:$0xff]
  %v163 = vld [vmem:[%s2 + $0x3e8] sm:$0xff]
  %v164 = vld [vmem:[%s2 + $0x3f0] sm:$0xff]
  %v165 = vld [vmem:[%s2 + $0x3f8] sm:$0xff]
  %v166 = vld [vmem:[%s2 + $0x400] sm:$0xff]
  %v167 = vld [vmem:[%s2 + $0x408] sm:$0xff]
  %v168 = vld [vmem:[%s2 + $0x410] sm:$0xff]
  %v169 = vld [vmem:[%s2 + $0x418] sm:$0xff]
  %v170 = vld [vmem:[%s2 + $0x420] sm:$0xff]
  %v171 = vld [vmem:[%s2 + $0x428] sm:$0xff]
  %v172 = vld [vmem:[%s2 + $0x430] sm:$0xff]
  %v173 = vld [vmem:[%s2 + $0x438] sm:$0xff]
  %v174 = vld [vmem:[%s2 + $0x440] sm:$0xff]
  %v175 = vld [vmem:[%s2 + $0x448] sm:$0xff]
  %v176 = vld [vmem:[%s2 + $0x450] sm:$0xff]
  %v177 = vld [vmem:[%s2 + $0x458] sm:$0xff]
  %v178 = vld [vmem:[%s2 + $0x460] sm:$0xff]
  %v179 = vld [vmem:[%s2 + $0x468] sm:$0xff]
  %v180 = vld [vmem:[%s2 + $0x470] sm:$0xff]
  %v181 = vld [vmem:[%s2 + $0x478] sm:$0xff]
  %v182 = vld [vmem:[%s2 + $0x480] sm:$0xff]
  %v183 = vld [vmem:[%s2 + $0x488] sm:$0xff]
  %v184 = vld [vmem:[%s2 + $0x490] sm:$0xff]
  %v185 = vld [vmem:[%s2 + $0x498] sm:$0xff]
  %v186 = vld [vmem:[%s2 + $0x4a0] sm:$0xff]
  %v187 = vld [vmem:[%s2 + $0x4a8] sm:$0xff]
  %v188 = vld [vmem:[%s2 + $0x4b0] sm:$0xff]
  %v189 = vld [vmem:[%s2 + $0x4b8] sm:$0xff]
  %v190 = vld [vmem:[%s2 + $0x4c0] sm:$0xff]
  %v191 = vld [vmem:[%s2 + $0x4c8] sm:$0xff]
  %v192 = vld [vmem:[%s2 + $0x4d0] sm:$0xff]
  %v193 = vld [vmem:[%s2 + $0x4d8] sm:$0xff]
  %v194 = vld [vmem:[%s2 + $0x4e0] sm:$0xff]
  %v195 = vld [vmem:[%s2 + $0x4e8] sm:$0xff]
  %v196 = vld [vmem:[%s2 + $0x4f0] sm:$0xff]
  %v197 = vld [vmem:[%s2 + $0x4f8] sm:$0xff]
  %v198 = vld [vmem:[%s2 + $0x500] sm:$0xff]
  %v199 = vld [vmem:[%s2 + $0x508] sm:$0xff]
  %v200 = vld [vmem:[%s2 + $0x510] sm:$0xff]
  %v201 = vld [vmem:[%s2 + $0x518] sm:$0xff]
  %v202 = vld [vmem:[%s2 + $0x520] sm:$0xff]
  %v203 = vld [vmem:[%s2 + $0x528] sm:$0xff]
  %v204 = vld [vmem:[%s2 + $0x530] sm:$0xff]
  %v205 = vld [vmem:[%s2 + $0x538] sm:$0xff]
  %v206 = vld [vmem:[%s2 + $0x540] sm:$0xff]
  %v207 = vld [vmem:[%s2 + $0x548] sm:$0xff]
  %v208 = vld [vmem:[%s2 + $0x550] sm:$0xff]
  %v209 = vld [vmem:[%s2 + $0x558] sm:$0xff]
  %v210 = vld [vmem:[%s2 + $0x560] sm:$0xff]
  %v211 = vld [vmem:[%s2 + $0x568] sm:$0xff]
  %v212 = vld [vmem:[%s2 + $0x570] sm:$0xff]
  %v213 = vld [vmem:[%s2 + $0x578] sm:$0xff]
  %v214 = vld [vmem:[%s2 + $0x580] sm:$0xff]
  %v215 = vld [vmem:[%s2 + $0x588] sm:$0xff]
  %v216 = vld [vmem:[%s2 + $0x590] sm:$0xff]
  %v217 = vld [vmem:[%s2 + $0x598] sm:$0xff]
  %v218 = vld [vmem:[%s2 + $0x5a0] sm:$0xff]
  %v219 = vld [vmem:[%s2 + $0x5a8] sm:$0xff]
  %v220 = vld [vmem:[%s2 + $0x5b0] sm:$0xff]
  %v221 = vld [vmem:[%s2 + $0x5b8] sm:$0xff]
  %v222 = vld [vmem:[%s2 + $0x5c0] sm:$0xff]
  %v223 = vld [vmem:[%s2 + $0x5c8] sm:$0xff]
  %v224 = vld [vmem:[%s2 + $0x5d0] sm:$0xff]
  %v225 = vld [vmem:[%s2 + $0x5d8] sm:$0xff]
  %v226 = vld [vmem:[%s2 + $0x5e0] sm:$0xff]
  %v227 = vld [vmem:[%s2 + $0x5e8] sm:$0xff]
  %v228 = vld [vmem:[%s2 + $0x5f0] sm:$0xff]
  %v229 = vld [vmem:[%s2 + $0x5f8] sm:$0xff]
  %v230 = vld [vmem:[%s2 + $0x600] sm:$0xff]
  %v231 = vld [vmem:[%s2 + $0x608] sm:$0xff]
  %v232 = vld [vmem:[%s2 + $0x610] sm:$0xff]
  %v233 = vld [vmem:[%s2 + $0x618] sm:$0xff]
  %v234 = vld [vmem:[%s2 + $0x620] sm:$0xff]
  %v235 = vld [vmem:[%s2 + $0x628] sm:$0xff]
  %v236 = vld [vmem:[%s2 + $0x630] sm:$0xff]
  %v237 = vld [vmem:[%s2 + $0x638] sm:$0xff]
  %v238 = vld [vmem:[%s2 + $0x640] sm:$0xff]
  %v239 = vld [vmem:[%s2 + $0x648] sm:$0xff]
  %v240 = vld [vmem:[%s2 + $0x650] sm:$0xff]
  %v241 = vld [vmem:[%s2 + $0x658] sm:$0xff]
  %v242 = vld [vmem:[%s2 + $0x660] sm:$0xff]
  %v243 = vld [vmem:[%s2 + $0x668] sm:$0xff]
  %v244 = vld [vmem:[%s2 + $0x670] sm:$0xff]
  %v245 = vld [vmem:[%s2 + $0x678] sm:$0xff]
  %v246 = vld [vmem:[%s2 + $0x680] sm:$0xff]
  %v247 = vld [vmem:[%s2 + $0x688] sm:$0xff]
  %v248 = vld [vmem:[%s2 + $0x690] sm:$0xff]
  %v249 = vld [vmem:[%s2 + $0x698] sm:$0xff]
  %v250 = vld [vmem:[%s2 + $0x6a0] sm:$0xff]
  %v251 = vld [vmem:[%s2 + $0x6a8] sm:$0xff]
  %v252 = vld [vmem:[%s2 + $0x6b0] sm:$0xff]
  %v253 = vld [vmem:[%s2 + $0x6b8] sm:$0xff]
  %v254 = vld [vmem:[%s2 + $0x6c0] sm:$0xff]
  %v255 = vld [vmem:[%s2 + $0x6c8] sm:$0xff]
  %v256 = vld [vmem:[%s2 + $0x6d0] sm:$0xff]
  %v257 = vld [vmem:[%s2 + $0x6d8] sm:$0xff]
  %v258 = vld [vmem:[%s2 + $0x6e0] sm:$0xff]
  %v259 = vld [vmem:[%s2 + $0x6e8] sm:$0xff]
  %v260 = vld [vmem:[%s2 + $0x6f0] sm:$0xff]
  %v261 = vld [vmem:[%s2 + $0x6f8] sm:$0xff]
  %v262 = vld [vmem:[%s2 + $0x700] sm:$0xff]
  %v263 = vld [vmem:[%s2 + $0x708] sm:$0xff]
  %v264 = vld [vmem:[%s2 + $0x710] sm:$0xff]
  %v265 = vld [vmem:[%s2 + $0x718] sm:$0xff]
  %v266 = vld [vmem:[%s2 + $0x720] sm:$0xff]
  %v267 = vld [vmem:[%s2 + $0x728] sm:$0xff]
  %v268 = vld [vmem:[%s2 + $0x730] sm:$0xff]
  %v269 = vld [vmem:[%s2 + $0x738] sm:$0xff]
  %v270 = vld [vmem:[%s2 + $0x740] sm:$0xff]
  %v271 = vld [vmem:[%s2 + $0x748] sm:$0xff]
  %v272 = vld [vmem:[%s2 + $0x750] sm:$0xff]
  %v273 = vld [vmem:[%s2 + $0x758] sm:$0xff]
  %v274 = vld [vmem:[%s2 + $0x760] sm:$0xff]
  %v275 = vld [vmem:[%s2 + $0x768] sm:$0xff]
  %v276 = vld [vmem:[%s2 + $0x770] sm:$0xff]
  %v277 = vld [vmem:[%s2 + $0x778] sm:$0xff]
  %v278 = vld [vmem:[%s2 + $0x780] sm:$0xff]
  %v279 = vld [vmem:[%s2 + $0x788] sm:$0xff]
  %v280 = vld [vmem:[%s2 + $0x790] sm:$0xff]
  %v281 = vld [vmem:[%s2 + $0x798] sm:$0xff]
  %v282 = vld [vmem:[%s2 + $0x7a0] sm:$0xff]
  %v283 = vld [vmem:[%s2 + $0x7a8] sm:$0xff]
  %v284 = vld [vmem:[%s2 + $0x7b0] sm:$0xff]
  %v285 = vld [vmem:[%s2 + $0x7b8] sm:$0xff]
  %v286 = vld [vmem:[%s2 + $0x7c0] sm:$0xff]
  %v287 = vld [vmem:[%s2 + $0x7c8] sm:$0xff]
  %v288 = vld [vmem:[%s2 + $0x7d0] sm:$0xff]
  %v289 = vld [vmem:[%s2 + $0x7d8] sm:$0xff]
  %v290 = vld [vmem:[%s2 + $0x7e0] sm:$0xff]
  %v291 = vld [vmem:[%s2 + $0x7e8] sm:$0xff]
  %v292 = vld [vmem:[%s2 + $0x7f0] sm:$0xff]
  %v293 = vld [vmem:[%s2 + $0x7f8] sm:$0xff]
  %v294 = vld [vmem:[%s2 + $0x800] sm:$0xff]
  %v295 = vld [vmem:[%s2 + $0x808] sm:$0xff]
  %v296 = vld [vmem:[%s2 + $0x810] sm:$0xff]
  %v297 = vld [vmem:[%s2 + $0x818] sm:$0xff]
  %v298 = vld [vmem:[%s2 + $0x820] sm:$0xff]
  %v299 = vld [vmem:[%s2 + $0x828] sm:$0xff]
  %v300 = vld [vmem:[%s2 + $0x830] sm:$0xff]
  %v301 = vld [vmem:[%s2 + $0x838] sm:$0xff]
  %v302 = vld [vmem:[%s2 + $0x840] sm:$0xff]
  %v303 = vld [vmem:[%s2 + $0x848] sm:$0xff]
  %v304 = vld [vmem:[%s2 + $0x850] sm:$0xff]
  %v305 = vld [vmem:[%s2 + $0x858] sm:$0xff]
  %v306 = vld [vmem:[%s2 + $0x860] sm:$0xff]
  %v307 = vld [vmem:[%s2 + $0x868] sm:$0xff]
  %v308 = vld [vmem:[%s2 + $0x870] sm:$0xff]
  %v309 = vld [vmem:[%s2 + $0x878] sm:$0xff]
  %v310 = vld [vmem:[%s2 + $0x880] sm:$0xff]
  %v311 = vld [vmem:[%s2 + $0x888] sm:$0xff]
  %v312 = vld [vmem:[%s2 + $0x890] sm:$0xff]
  %v313 = vld [vmem:[%s2 + $0x898] sm:$0xff]
  %v314 = vld [vmem:[%s2 + $0x8a0] sm:$0xff]
  %v315 = vld [vmem:[%s2 + $0x8a8] sm:$0xff]
  %v316 = vld [vmem:[%s2 + $0x8b0] sm:$0xff]
  %v317 = vld [vmem:[%s2 + $0x8b8] sm:$0xff]
  %v318 = vld [vmem:[%s2 + $0x8c0] sm:$0xff]
  %v319 = vld [vmem:[%s2 + $0x8c8] sm:$0xff]
  %v320 = vld [vmem:[%s2 + $0x8d0] sm:$0xff]
  %v321 = vld [vmem:[%s2 + $0x8d8] sm:$0xff]
  %v322 = vld [vmem:[%s2 + $0x8e0] sm:$0xff]
  %v323 = vld [vmem:[%s2 + $0x8e8] sm:$0xff]
  %v324 = vld [vmem:[%s2 + $0x8f0] sm:$0xff]
  %v325 = vld [vmem:[%s2 + $0x8f8] sm:$0xff]
  %v326 = vld [vmem:[%s2 + $0x900] sm:$0xff]
  %v327 = vld [vmem:[%s2 + $0x908] sm:$0xff]
  %v328 = vld [vmem:[%s2 + $0x910] sm:$0xff]
  %v329 = vld [vmem:[%s2 + $0x918] sm:$0xff]
  %v330 = vld [vmem:[%s2 + $0x920] sm:$0xff]
  %v331 = vld [vmem:[%s2 + $0x928] sm:$0xff]
  %v332 = vld [vmem:[%s2 + $0x930] sm:$0xff]
  %v333 = vld [vmem:[%s2 + $0x938] sm:$0xff]
  %v334 = vld [vmem:[%s2 + $0x940] sm:$0xff]
  %v335 = vld [vmem:[%s2 + $0x948] sm:$0xff]
  %v336 = vld [vmem:[%s2 + $0x950] sm:$0xff]
  %v337 = vld [vmem:[%s2 + $0x958] sm:$0xff]
  %v338 = vld [vmem:[%s2 + $0x960] sm:$0xff]
  %v339 = vld [vmem:[%s2 + $0x968] sm:$0xff]
  %v340 = vld [vmem:[%s2 + $0x970] sm:$0xff]
  %v341 = vld [vmem:[%s2 + $0x978] sm:$0xff]
  %v342 = vld [vmem:[%s2 + $0x980] sm:$0xff]
  %v343 = vld [vmem:[%s2 + $0x988] sm:$0xff]
  %v344 = vld [vmem:[%s2 + $0x990] sm:$0xff]
  %v345 = vld [vmem:[%s2 + $0x998] sm:$0xff]
  %v346 = vld [vmem:[%s2 + $0x9a0] sm:$0xff]
  %v347 = vld [vmem:[%s2 + $0x9a8] sm:$0xff]
  %v348 = vld [vmem:[%s2 + $0x9b0] sm:$0xff]
  %v349 = vld [vmem:[%s2 + $0x9b8] sm:$0xff]
  %v350 = vld [vmem:[%s2 + $0x9c0] sm:$0xff]
  %v351 = vld [vmem:[%s2 + $0x9c8] sm:$0xff]
  %v352 = vld [vmem:[%s2 + $0x9d0] sm:$0xff]
  %v353 = vld [vmem:[%s2 + $0x9d8] sm:$0xff]
  %v354 = vld [vmem:[%s2 + $0x9e0] sm:$0xff]
  %v355 = vld [vmem:[%s2 + $0x9e8] sm:$0xff]
  %v356 = vld [vmem:[%s2 + $0x9f0] sm:$0xff]
  %v357 = vld [vmem:[%s2 + $0x9f8] sm:$0xff]
  %v358 = vld [vmem:[%s2 + $0xa00] sm:$0xff]
  %v359 = vld [vmem:[%s2 + $0xa08] sm:$0xff]
  %v360 = vld [vmem:[%s2 + $0xa10] sm:$0xff]
  %v361 = vld [vmem:[%s2 + $0xa18] sm:$0xff]
  %v362 = vld [vmem:[%s2 + $0xa20] sm:$0xff]
  %v363 = vld [vmem:[%s2 + $0xa28] sm:$0xff]
  %v364 = vld [vmem:[%s2 + $0xa30] sm:$0xff]
  %v365 = vld [vmem:[%s2 + $0xa38] sm:$0xff]
  %v366 = vld [vmem:[%s2 + $0xa40] sm:$0xff]
  %v367 = vld [vmem:[%s2 + $0xa48] sm:$0xff]
  %v368 = vld [vmem:[%s2 + $0xa50] sm:$0xff]
  %v369 = vld [vmem:[%s2 + $0xa58] sm:$0xff]
  %v370 = vld [vmem:[%s2 + $0xa60] sm:$0xff]
  %v371 = vld [vmem:[%s2 + $0xa68] sm:$0xff]
  %v372 = vld [vmem:[%s2 + $0xa70] sm:$0xff]
  %v373 = vld [vmem:[%s2 + $0xa78] sm:$0xff]
  %v374 = vld [vmem:[%s2 + $0xa80] sm:$0xff]
  %v375 = vld [vmem:[%s2 + $0xa88] sm:$0xff]
  %v376 = vld [vmem:[%s2 + $0xa90] sm:$0xff]
  %v377 = vld [vmem:[%s2 + $0xa98] sm:$0xff]
  %v378 = vld [vmem:[%s2 + $0xaa0] sm:$0xff]
  %v379 = vld [vmem:[%s2 + $0xaa8] sm:$0xff]
  %v380 = vld [vmem:[%s2 + $0xab0] sm:$0xff]
  %v381 = vld [vmem:[%s2 + $0xab8] sm:$0xff]
  %v382 = vld [vmem:[%s2 + $0xac0] sm:$0xff]
  %v383 = vld [vmem:[%s2 + $0xac8] sm:$0xff]
  %v384 = vld [vmem:[%s2 + $0xad0] sm:$0xff]
  %v385 = vld [vmem:[%s2 + $0xad8] sm:$0xff]
  %v386 = vld [vmem:[%s2 + $0xae0] sm:$0xff]
  %v387 = vld [vmem:[%s2 + $0xae8] sm:$0xff]
  %v388 = vld [vmem:[%s2 + $0xaf0] sm:$0xff]
  %v389 = vld [vmem:[%s2 + $0xaf8] sm:$0xff]
  %v390 = vld [vmem:[%s2 + $0xb00] sm:$0xff]
  %v391 = vld [vmem:[%s2 + $0xb08] sm:$0xff]
  %v392 = vld [vmem:[%s2 + $0xb10] sm:$0xff]
  %v393 = vld [vmem:[%s2 + $0xb18] sm:$0xff]
  %v394 = vld [vmem:[%s2 + $0xb20] sm:$0xff]
  %v395 = vld [vmem:[%s2 + $0xb28] sm:$0xff]
  %v396 = vld [vmem:[%s2 + $0xb30] sm:$0xff]
  %v397 = vld [vmem:[%s2 + $0xb38] sm:$0xff]
  %v398 = vld [vmem:[%s2 + $0xb40] sm:$0xff]
  %v399 = vld [vmem:[%s2 + $0xb48] sm:$0xff]
  %v400 = vld [vmem:[%s2 + $0xb50] sm:$0xff]
  %v401 = vld [vmem:[%s2 + $0xb58] sm:$0xff]
  %v402 = vld [vmem:[%s2 + $0xb60] sm:$0xff]
  %v403 = vld [vmem:[%s2 + $0xb68] sm:$0xff]
  %v404 = vld [vmem:[%s2 + $0xb70] sm:$0xff]
  %v405 = vld [vmem:[%s2 + $0xb78] sm:$0xff]
  %v406 = vld [vmem:[%s2 + $0xb80] sm:$0xff]
  %v407 = vld [vmem:[%s2 + $0xb88] sm:$0xff]
  %v408 = vld [vmem:[%s2 + $0xb90] sm:$0xff]
  %v409 = vld [vmem:[%s2 + $0xb98] sm:$0xff]
  %v410 = vld [vmem:[%s2 + $0xba0] sm:$0xff]
  %v411 = vld [vmem:[%s2 + $0xba8] sm:$0xff]
  %v412 = vld [vmem:[%s2 + $0xbb0] sm:$0xff]
  %v413 = vld [vmem:[%s2 + $0xbb8] sm:$0xff]
  %v414 = vld [vmem:[%s2 + $0xbc0] sm:$0xff]
  %v415 = vld [vmem:[%s2 + $0xbc8] sm:$0xff]
  %v416 = vld [vmem:[%s2 + $0xbd0] sm:$0xff]
  %v417 = vld [vmem:[%s2 + $0xbd8] sm:$0xff]
  %v418 = vld [vmem:[%s2 + $0xbe0] sm:$0xff]
  %v419 = vld [vmem:[%s2 + $0xbe8] sm:$0xff]
  %v420 = vld [vmem:[%s2 + $0xbf0] sm:$0xff]
  %v421 = vld [vmem:[%s2 + $0xbf8] sm:$0xff]
  %v422 = vld [vmem:[%s2 + $0xc00] sm:$0xff]
  %v423 = vld [vmem:[%s2 + $0xc08] sm:$0xff]
  %v424 = vld [vmem:[%s2 + $0xc10] sm:$0xff]
  %v425 = vld [vmem:[%s2 + $0xc18] sm:$0xff]
  %v426 = vld [vmem:[%s2 + $0xc20] sm:$0xff]
  %v427 = vld [vmem:[%s2 + $0xc28] sm:$0xff]
  %v428 = vld [vmem:[%s2 + $0xc30] sm:$0xff]
  %v429 = vld [vmem:[%s2 + $0xc38] sm:$0xff]
  %v430 = vld [vmem:[%s2 + $0xc40] sm:$0xff]
  %v431 = vld [vmem:[%s2 + $0xc48] sm:$0xff]
  %v432 = vld [vmem:[%s2 + $0xc50] sm:$0xff]
  %v433 = vld [vmem:[%s2 + $0xc58] sm:$0xff]
  %v434 = vld [vmem:[%s2 + $0xc60] sm:$0xff]
  %v435 = vld [vmem:[%s2 + $0xc68] sm:$0xff]
  %v436 = vld [vmem:[%s2 + $0xc70] sm:$0xff]
  %v437 = vld [vmem:[%s2 + $0xc78] sm:$0xff]
  %v438 = vld [vmem:[%s2 + $0xc80] sm:$0xff]
  %v439 = vld [vmem:[%s2 + $0xc88] sm:$0xff]
  %v440 = vld [vmem:[%s2 + $0xc90] sm:$0xff]
  %v441 = vld [vmem:[%s2 + $0xc98] sm:$0xff]
  %v442 = vld [vmem:[%s2 + $0xca0] sm:$0xff]
  %v443 = vld [vmem:[%s2 + $0xca8] sm:$0xff]
  %v444 = vld [vmem:[%s2 + $0xcb0] sm:$0xff]
  %v445 = vld [vmem:[%s2 + $0xcb8] sm:$0xff]
  %v446 = vld [vmem:[%s2 + $0xcc0] sm:$0xff]
  %v447 = vld [vmem:[%s2 + $0xcc8] sm:$0xff]
  %v448 = vld [vmem:[%s2 + $0xcd0] sm:$0xff]
  %v449 = vld [vmem:[%s2 + $0xcd8] sm:$0xff]
  %v450 = vld [vmem:[%s2 + $0xce0] sm:$0xff]
  %v451 = vld [vmem:[%s2 + $0xce8] sm:$0xff]
  %v452 = vld [vmem:[%s2 + $0xcf0] sm:$0xff]
  %v453 = vld [vmem:[%s2 + $0xcf8] sm:$0xff]
  %v454 = vld [vmem:[%s2 + $0xd00] sm:$0xff]
  %v455 = vld [vmem:[%s2 + $0xd08] sm:$0xff]
  %v456 = vld [vmem:[%s2 + $0xd10] sm:$0xff]
  %v457 = vld [vmem:[%s2 + $0xd18] sm:$0xff]
  %v458 = vld [vmem:[%s2 + $0xd20] sm:$0xff]
  %v459 = vld [vmem:[%s2 + $0xd28] sm:$0xff]
  %v460 = vld [vmem:[%s2 + $0xd30] sm:$0xff]
  %v461 = vld [vmem:[%s2 + $0xd38] sm:$0xff]
  %v462 = vld [vmem:[%s2 + $0xd40] sm:$0xff]
  %v463 = vld [vmem:[%s2 + $0xd48] sm:$0xff]
  %v464 = vld [vmem:[%s2 + $0xd50] sm:$0xff]
  %v465 = vld [vmem:[%s2 + $0xd58] sm:$0xff]
  %v466 = vld [vmem:[%s2 + $0xd60] sm:$0xff]
  %v467 = vld [vmem:[%s2 + $0xd68] sm:$0xff]
  %v468 = vld [vmem:[%s2 + $0xd70] sm:$0xff]
  %v469 = vld [vmem:[%s2 + $0xd78] sm:$0xff]
  %v470 = vld [vmem:[%s2 + $0xd80] sm:$0xff]
  %v471 = vld [vmem:[%s2 + $0xd88] sm:$0xff]
  %v472 = vld [vmem:[%s2 + $0xd90] sm:$0xff]
  %v473 = vld [vmem:[%s2 + $0xd98] sm:$0xff]
  %v474 = vld [vmem:[%s2 + $0xda0] sm:$0xff]
  %v475 = vld [vmem:[%s2 + $0xda8] sm:$0xff]
  %v476 = vld [vmem:[%s2 + $0xdb0] sm:$0xff]
  %v477 = vld [vmem:[%s2 + $0xdb8] sm:$0xff]
  %v478 = vld [vmem:[%s2 + $0xdc0] sm:$0xff]
  %v479 = vld [vmem:[%s2 + $0xdc8] sm:$0xff]
  %v480 = vld [vmem:[%s2 + $0xdd0] sm:$0xff]
  %v481 = vld [vmem:[%s2 + $0xdd8] sm:$0xff]
  %v482 = vld [vmem:[%s2 + $0xde0] sm:$0xff]
  %v483 = vld [vmem:[%s2 + $0xde8] sm:$0xff]
  %v484 = vld [vmem:[%s2 + $0xdf0] sm:$0xff]
  %v485 = vld [vmem:[%s2 + $0xdf8] sm:$0xff]
  %v486 = vld [vmem:[%s2 + $0xe00] sm:$0xff]
  %v487 = vld [vmem:[%s2 + $0xe08] sm:$0xff]
  %v488 = vld [vmem:[%s2 + $0xe10] sm:$0xff]
  %v489 = vld [vmem:[%s2 + $0xe18] sm:$0xff]
  %v490 = vld [vmem:[%s2 + $0xe20] sm:$0xff]
  %v491 = vld [vmem:[%s2 + $0xe28] sm:$0xff]
  %v492 = vld [vmem:[%s2 + $0xe30] sm:$0xff]
  %v493 = vld [vmem:[%s2 + $0xe38] sm:$0xff]
  %v494 = vld [vmem:[%s2 + $0xe40] sm:$0xff]
  %v495 = vld [vmem:[%s2 + $0xe48] sm:$0xff]
  %v496 = vld [vmem:[%s2 + $0xe50] sm:$0xff]
  %v497 = vld [vmem:[%s2 + $0xe58] sm:$0xff]
  %v498 = vld [vmem:[%s2 + $0xe60] sm:$0xff]
  %v499 = vld [vmem:[%s2 + $0xe68] sm:$0xff]
  %v500 = vld [vmem:[%s2 + $0xe70] sm:$0xff]
  %v501 = vld [vmem:[%s2 + $0xe78] sm:$0xff]
  %v502 = vld [vmem:[%s2 + $0xe80] sm:$0xff]
  %v503 = vld [vmem:[%s2 + $0xe88] sm:$0xff]
  %v504 = vld [vmem:[%s2 + $0xe90] sm:$0xff]
  %v505 = vld [vmem:[%s2 + $0xe98] sm:$0xff]
  %v506 = vld [vmem:[%s2 + $0xea0] sm:$0xff]
  %v507 = vld [vmem:[%s2 + $0xea8] sm:$0xff]
  %v508 = vld [vmem:[%s2 + $0xeb0] sm:$0xff]
  %v509 = vld [vmem:[%s2 + $0xeb8] sm:$0xff]
  %v510 = vld [vmem:[%s2 + $0xec0] sm:$0xff]
  %v511 = vld [vmem:[%s2 + $0xec8] sm:$0xff]
  %v512 = vld [vmem:[%s2 + $0xed0] sm:$0xff]
  %v513 = vld [vmem:[%s2 + $0xed8] sm:$0xff]
  %v514 = vld [vmem:[%s2 + $0xee0] sm:$0xff]
  %v515 = vld [vmem:[%s2 + $0xee8] sm:$0xff]
  %v516 = vld [vmem:[%s2 + $0xef0] sm:$0xff]
  %v517 = vld [vmem:[%s2 + $0xef8] sm:$0xff]
  %v518 = vld [vmem:[%s2 + $0xf00] sm:$0xff]
  %v519 = vld [vmem:[%s2 + $0xf08] sm:$0xff]
  %v520 = vld [vmem:[%s2 + $0xf10] sm:$0xff]
  %v521 = vld [vmem:[%s2 + $0xf18] sm:$0xff]
  %v522 = vld [vmem:[%s2 + $0xf20] sm:$0xff]
  %v523 = vld [vmem:[%s2 + $0xf28] sm:$0xff]
  %v524 = vld [vmem:[%s2 + $0xf30] sm:$0xff]
  %v525 = vld [vmem:[%s2 + $0xf38] sm:$0xff]
  %v526 = vld [vmem:[%s2 + $0xf40] sm:$0xff]
  %v527 = vld [vmem:[%s2 + $0xf48] sm:$0xff]
  %v528 = vld [vmem:[%s2 + $0xf50] sm:$0xff]
  %v529 = vld [vmem:[%s2 + $0xf58] sm:$0xff]
  %v530 = vld [vmem:[%s2 + $0xf60] sm:$0xff]
  %v531 = vld [vmem:[%s2 + $0xf68] sm:$0xff]
  %v532 = vld [vmem:[%s2 + $0xf70] sm:$0xff]
  %v533 = vld [vmem:[%s2 + $0xf78] sm:$0xff]
  %v534 = vld [vmem:[%s2 + $0xf80] sm:$0xff]
  %v535 = vld [vmem:[%s2 + $0xf88] sm:$0xff]
  %v536 = vld [vmem:[%s2 + $0xf90] sm:$0xff]
  %v537 = vld [vmem:[%s2 + $0xf98] sm:$0xff]
  %v538 = vld [vmem:[%s2 + $0xfa0] sm:$0xff]
  %v539 = vld [vmem:[%s2 + $0xfa8] sm:$0xff]
  %v540 = vld [vmem:[%s2 + $0xfb0] sm:$0xff]
  %v541 = vld [vmem:[%s2 + $0xfb8] sm:$0xff]
  %v542 = vld [vmem:[%s2 + $0xfc0] sm:$0xff]
  %v543 = vld [vmem:[%s2 + $0xfc8] sm:$0xff]
  %v544 = vld [vmem:[%s2 + $0xfd0] sm:$0xff]
  %v545 = vld [vmem:[%s2 + $0xfd8] sm:$0xff]
  %v546 = vld [vmem:[%s2 + $0xfe0] sm:$0xff]
  %v547 = vld [vmem:[%s2 + $0xfe8] sm:$0xff]
  %v548 = vld [vmem:[%s2 + $0xff0] sm:$0xff]
  %v549 = vld [vmem:[%s2 + $0xff8] sm:$0xff]
  %s550 = sld [smem:[#allocation3]]
  %v551 = vstv %s550
  %v556 = vperm.slane %v34, 0
  %v557 = vperm.slane %v34, 1
  %v558 = vperm.slane %v34, 2
  %v559 = vperm.slane %v34, 3
  %v560 = vperm.slane %v34, 4
  %v561 = vperm.slane %v34, 5
  %v562 = vperm.slane %v34, 6
  %v563 = vperm.slane %v34, 7
  %v564 = vperm.slane %v35, 0
  %v565 = vperm.slane %v35, 1
  %v566 = vperm.slane %v35, 2
  %v567 = vperm.slane %v35, 3
  %v568 = vperm.slane %v35, 4
  %v569 = vperm.slane %v35, 5
  %v570 = vperm.slane %v35, 6
  %v571 = vperm.slane %v35, 7
  %v572 = vperm.slane %v36, 0
  %v573 = vperm.slane %v36, 1
  %v574 = vperm.slane %v36, 2
  %v575 = vperm.slane %v36, 3
  %v576 = vperm.slane %v36, 4
  %v577 = vperm.slane %v36, 5
  %v578 = vperm.slane %v36, 6
  %v579 = vperm.slane %v36, 7
  %v580 = vperm.slane %v37, 0
  %v581 = vperm.slane %v37, 1
  %v582 = vperm.slane %v37, 2
  %v583 = vperm.slane %v37, 3
  %v584 = vperm.slane %v37, 4
  %v585 = vperm.slane %v37, 5
  %v586 = vperm.slane %v37, 6
  %v587 = vperm.slane %v37, 7
  %620 = vmatpush.msra.mxu0 %v53
  %621 = vmatpush.msra.mxu0 %v52
  %622 = vmatpush.msra.mxu0 %v51
  %623 = vmatpush.msra.mxu0 %v50
  %624 = vmatpush.msra.mxu0 %v49
  %625 = vmatpush.msra.mxu0 %v48
  %626 = vmatpush.msra.mxu0 %v47
  %627 = vmatpush.msra.mxu0 %v46
  %628 = vmatpush.msra.mxu0 %v45
  %629 = vmatpush.msra.mxu0 %v44
  %630 = vmatpush.msra.mxu0 %v43
  %631 = vmatpush.msra.mxu0 %v42
  %632 = vmatpush.msra.mxu0 %v41
  %633 = vmatpush.msra.mxu0 %v40
  %634 = vmatpush.msra.mxu0 %v39
  %635 = vmatpush.msra.mxu0 %v38
  %636 = vmatmul.f32.gmra.mxu0 %v556
  %v637 = vpop.f32.mrf.mxu0
  %v638 = vadd.f32 %v551, %v637
  %639 = vdwg.mxu0
  %640 = vmatpush.msra.mxu0 %v69
  %641 = vmatpush.msra.mxu0 %v68
  %642 = vmatpush.msra.mxu0 %v67
  %643 = vmatpush.msra.mxu0 %v66
  %644 = vmatpush.msra.mxu0 %v65
  %645 = vmatpush.msra.mxu0 %v64
  %646 = vmatpush.msra.mxu0 %v63
  %647 = vmatpush.msra.mxu0 %v62
  %648 = vmatpush.msra.mxu0 %v61
  %649 = vmatpush.msra.mxu0 %v60
  %650 = vmatpush.msra.mxu0 %v59
  %651 = vmatpush.msra.mxu0 %v58
  %652 = vmatpush.msra.mxu0 %v57
  %653 = vmatpush.msra.mxu0 %v56
  %654 = vmatpush.msra.mxu0 %v55
  %655 = vmatpush.msra.mxu0 %v54
  %656 = vmatmul.f32.gmra.mxu0 %v557
  %v657 = vpop.f32.mrf.mxu0
  %v658 = vadd.f32 %v638, %v657
  %659 = vdwg.mxu0
  %660 = vmatpush.msra.mxu0 %v85
  %661 = vmatpush.msra.mxu0 %v84
  %662 = vmatpush.msra.mxu0 %v83
  %663 = vmatpush.msra.mxu0 %v82
  %664 = vmatpush.msra.mxu0 %v81
  %665 = vmatpush.msra.mxu0 %v80
  %666 = vmatpush.msra.mxu0 %v79
  %667 = vmatpush.msra.mxu0 %v78
  %668 = vmatpush.msra.mxu0 %v77
  %669 = vmatpush.msra.mxu0 %v76
  %670 = vmatpush.msra.mxu0 %v75
  %671 = vmatpush.msra.mxu0 %v74
  %672 = vmatpush.msra.mxu0 %v73
  %673 = vmatpush.msra.mxu0 %v72
  %674 = vmatpush.msra.mxu0 %v71
  %675 = vmatpush.msra.mxu0 %v70
  %676 = vmatmul.f32.gmra.mxu0 %v558
  %v677 = vpop.f32.mrf.mxu0
  %v678 = vadd.f32 %v658, %v677
  %679 = vdwg.mxu0
  %680 = vmatpush.msra.mxu0 %v101
  %681 = vmatpush.msra.mxu0 %v100
  %682 = vmatpush.msra.mxu0 %v99
  %683 = vmatpush.msra.mxu0 %v98
  %684 = vmatpush.msra.mxu0 %v97
  %685 = vmatpush.msra.mxu0 %v96
  %686 = vmatpush.msra.mxu0 %v95
  %687 = vmatpush.msra.mxu0 %v94
  %688 = vmatpush.msra.mxu0 %v93
  %689 = vmatpush.msra.mxu0 %v92
  %690 = vmatpush.msra.mxu0 %v91
  %691 = vmatpush.msra.mxu0 %v90
  %692 = vmatpush.msra.mxu0 %v89
  %693 = vmatpush.msra.mxu0 %v88
  %694 = vmatpush.msra.mxu0 %v87
  %695 = vmatpush.msra.mxu0 %v86
  %696 = vmatmul.f32.gmra.mxu0 %v559
  %v697 = vpop.f32.mrf.mxu0
  %v698 = vadd.f32 %v678, %v697
  %699 = vdwg.mxu0
  %700 = vmatpush.msra.mxu0 %v117
  %701 = vmatpush.msra.mxu0 %v116
  %702 = vmatpush.msra.mxu0 %v115
  %703 = vmatpush.msra.mxu0 %v114
  %704 = vmatpush.msra.mxu0 %v113
  %705 = vmatpush.msra.mxu0 %v112
  %706 = vmatpush.msra.mxu0 %v111
  %707 = vmatpush.msra.mxu0 %v110
  %708 = vmatpush.msra.mxu0 %v109
  %709 = vmatpush.msra.mxu0 %v108
  %710 = vmatpush.msra.mxu0 %v107
  %711 = vmatpush.msra.mxu0 %v106
  %712 = vmatpush.msra.mxu0 %v105
  %713 = vmatpush.msra.mxu0 %v104
  %714 = vmatpush.msra.mxu0 %v103
  %715 = vmatpush.msra.mxu0 %v102
  %716 = vmatmul.f32.gmra.mxu0 %v560
  %v717 = vpop.f32.mrf.mxu0
  %v718 = vadd.f32 %v698, %v717
  %719 = vdwg.mxu0
  %720 = vmatpush.msra.mxu0 %v133
  %721 = vmatpush.msra.mxu0 %v132
  %722 = vmatpush.msra.mxu0 %v131
  %723 = vmatpush.msra.mxu0 %v130
  %724 = vmatpush.msra.mxu0 %v129
  %725 = vmatpush.msra.mxu0 %v128
  %726 = vmatpush.msra.mxu0 %v127
  %727 = vmatpush.msra.mxu0 %v126
  %728 = vmatpush.msra.mxu0 %v125
  %729 = vmatpush.msra.mxu0 %v124
  %730 = vmatpush.msra.mxu0 %v123
  %731 = vmatpush.msra.mxu0 %v122
  %732 = vmatpush.msra.mxu0 %v121
  %733 = vmatpush.msra.mxu0 %v120
  %734 = vmatpush.msra.mxu0 %v119
  %735 = vmatpush.msra.mxu0 %v118
  %736 = vmatmul.f32.gmra.mxu0 %v561
  %v737 = vpop.f32.mrf.mxu0
  %v738 = vadd.f32 %v718, %v737
  %739 = vdwg.mxu0
  %740 = vmatpush.msra.mxu0 %v149
  %741 = vmatpush.msra.mxu0 %v148
  %742 = vmatpush.msra.mxu0 %v147
  %743 = vmatpush.msra.mxu0 %v146
  %744 = vmatpush.msra.mxu0 %v145
  %745 = vmatpush.msra.mxu0 %v144
  %746 = vmatpush.msra.mxu0 %v143
  %747 = vmatpush.msra.mxu0 %v142
  %748 = vmatpush.msra.mxu0 %v141
  %749 = vmatpush.msra.mxu0 %v140
  %750 = vmatpush.msra.mxu0 %v139
  %751 = vmatpush.msra.mxu0 %v138
  %752 = vmatpush.msra.mxu0 %v137
  %753 = vmatpush.msra.mxu0 %v136
  %754 = vmatpush.msra.mxu0 %v135
  %755 = vmatpush.msra.mxu0 %v134
  %756 = vmatmul.f32.gmra.mxu0 %v562
  %v757 = vpop.f32.mrf.mxu0
  %v758 = vadd.f32 %v738, %v757
  %759 = vdwg.mxu0
  %760 = vmatpush.msra.mxu0 %v165
  %761 = vmatpush.msra.mxu0 %v164
  %762 = vmatpush.msra.mxu0 %v163
  %763 = vmatpush.msra.mxu0 %v162
  %764 = vmatpush.msra.mxu0 %v161
  %765 = vmatpush.msra.mxu0 %v160
  %766 = vmatpush.msra.mxu0 %v159
  %767 = vmatpush.msra.mxu0 %v158
  %768 = vmatpush.msra.mxu0 %v157
  %769 = vmatpush.msra.mxu0 %v156
  %770 = vmatpush.msra.mxu0 %v155
  %771 = vmatpush.msra.mxu0 %v154
  %772 = vmatpush.msra.mxu0 %v153
  %773 = vmatpush.msra.mxu0 %v152
  %774 = vmatpush.msra.mxu0 %v151
  %775 = vmatpush.msra.mxu0 %v150
  %776 = vmatmul.f32.gmra.mxu0 %v563
  %v777 = vpop.f32.mrf.mxu0
  %v778 = vadd.f32 %v758, %v777
  %779 = vdwg.mxu0
  %780 = vmatpush.msra.mxu0 %v181
  %781 = vmatpush.msra.mxu0 %v180
  %782 = vmatpush.msra.mxu0 %v179
  %783 = vmatpush.msra.mxu0 %v178
  %784 = vmatpush.msra.mxu0 %v177
  %785 = vmatpush.msra.mxu0 %v176
  %786 = vmatpush.msra.mxu0 %v175
  %787 = vmatpush.msra.mxu0 %v174
  %788 = vmatpush.msra.mxu0 %v173
  %789 = vmatpush.msra.mxu0 %v172
  %790 = vmatpush.msra.mxu0 %v171
  %791 = vmatpush.msra.mxu0 %v170
  %792 = vmatpush.msra.mxu0 %v169
  %793 = vmatpush.msra.mxu0 %v168
  %794 = vmatpush.msra.mxu0 %v167
  %795 = vmatpush.msra.mxu0 %v166
  %796 = vmatmul.f32.gmra.mxu0 %v564
  %v797 = vpop.f32.mrf.mxu0
  %v798 = vadd.f32 %v778, %v797
  %799 = vdwg.mxu0
  %800 = vmatpush.msra.mxu0 %v197
  %801 = vmatpush.msra.mxu0 %v196
  %802 = vmatpush.msra.mxu0 %v195
  %803 = vmatpush.msra.mxu0 %v194
  %804 = vmatpush.msra.mxu0 %v193
  %805 = vmatpush.msra.mxu0 %v192
  %806 = vmatpush.msra.mxu0 %v191
  %807 = vmatpush.msra.mxu0 %v190
  %808 = vmatpush.msra.mxu0 %v189
  %809 = vmatpush.msra.mxu0 %v188
  %810 = vmatpush.msra.mxu0 %v187
  %811 = vmatpush.msra.mxu0 %v186
  %812 = vmatpush.msra.mxu0 %v185
  %813 = vmatpush.msra.mxu0 %v184
  %814 = vmatpush.msra.mxu0 %v183
  %815 = vmatpush.msra.mxu0 %v182
  %816 = vmatmul.f32.gmra.mxu0 %v565
  %v817 = vpop.f32.mrf.mxu0
  %v818 = vadd.f32 %v798, %v817
  %819 = vdwg.mxu0
  %820 = vmatpush.msra.mxu0 %v213
  %821 = vmatpush.msra.mxu0 %v212
  %822 = vmatpush.msra.mxu0 %v211
  %823 = vmatpush.msra.mxu0 %v210
  %824 = vmatpush.msra.mxu0 %v209
  %825 = vmatpush.msra.mxu0 %v208
  %826 = vmatpush.msra.mxu0 %v207
  %827 = vmatpush.msra.mxu0 %v206
  %828 = vmatpush.msra.mxu0 %v205
  %829 = vmatpush.msra.mxu0 %v204
  %830 = vmatpush.msra.mxu0 %v203
  %831 = vmatpush.msra.mxu0 %v202
  %832 = vmatpush.msra.mxu0 %v201
  %833 = vmatpush.msra.mxu0 %v200
  %834 = vmatpush.msra.mxu0 %v199
  %835 = vmatpush.msra.mxu0 %v198
  %836 = vmatmul.f32.gmra.mxu0 %v566
  %v837 = vpop.f32.mrf.mxu0
  %v838 = vadd.f32 %v818, %v837
  %839 = vdwg.mxu0
  %840 = vmatpush.msra.mxu0 %v229
  %841 = vmatpush.msra.mxu0 %v228
  %842 = vmatpush.msra.mxu0 %v227
  %843 = vmatpush.msra.mxu0 %v226
  %844 = vmatpush.msra.mxu0 %v225
  %845 = vmatpush.msra.mxu0 %v224
  %846 = vmatpush.msra.mxu0 %v223
  %847 = vmatpush.msra.mxu0 %v222
  %848 = vmatpush.msra.mxu0 %v221
  %849 = vmatpush.msra.mxu0 %v220
  %850 = vmatpush.msra.mxu0 %v219
  %851 = vmatpush.msra.mxu0 %v218
  %852 = vmatpush.msra.mxu0 %v217
  %853 = vmatpush.msra.mxu0 %v216
  %854 = vmatpush.msra.mxu0 %v215
  %855 = vmatpush.msra.mxu0 %v214
  %856 = vmatmul.f32.gmra.mxu0 %v567
  %v857 = vpop.f32.mrf.mxu0
  %v858 = vadd.f32 %v838, %v857
  %859 = vdwg.mxu0
  %860 = vmatpush.msra.mxu0 %v245
  %861 = vmatpush.msra.mxu0 %v244
  %862 = vmatpush.msra.mxu0 %v243
  %863 = vmatpush.msra.mxu0 %v242
  %864 = vmatpush.msra.mxu0 %v241
  %865 = vmatpush.msra.mxu0 %v240
  %866 = vmatpush.msra.mxu0 %v239
  %867 = vmatpush.msra.mxu0 %v238
  %868 = vmatpush.msra.mxu0 %v237
  %869 = vmatpush.msra.mxu0 %v236
  %870 = vmatpush.msra.mxu0 %v235
  %871 = vmatpush.msra.mxu0 %v234
  %872 = vmatpush.msra.mxu0 %v233
  %873 = vmatpush.msra.mxu0 %v232
  %874 = vmatpush.msra.mxu0 %v231
  %875 = vmatpush.msra.mxu0 %v230
  %876 = vmatmul.f32.gmra.mxu0 %v568
  %v877 = vpop.f32.mrf.mxu0
  %v878 = vadd.f32 %v858, %v877
  %879 = vdwg.mxu0
  %880 = vmatpush.msra.mxu0 %v261
  %881 = vmatpush.msra.mxu0 %v260
  %882 = vmatpush.msra.mxu0 %v259
  %883 = vmatpush.msra.mxu0 %v258
  %884 = vmatpush.msra.mxu0 %v257
  %885 = vmatpush.msra.mxu0 %v256
  %886 = vmatpush.msra.mxu0 %v255
  %887 = vmatpush.msra.mxu0 %v254
  %888 = vmatpush.msra.mxu0 %v253
  %889 = vmatpush.msra.mxu0 %v252
  %890 = vmatpush.msra.mxu0 %v251
  %891 = vmatpush.msra.mxu0 %v250
  %892 = vmatpush.msra.mxu0 %v249
  %893 = vmatpush.msra.mxu0 %v248
  %894 = vmatpush.msra.mxu0 %v247
  %895 = vmatpush.msra.mxu0 %v246
  %896 = vmatmul.f32.gmra.mxu0 %v569
  %v897 = vpop.f32.mrf.mxu0
  %v898 = vadd.f32 %v878, %v897
  %899 = vdwg.mxu0
  %900 = vmatpush.msra.mxu0 %v277
  %901 = vmatpush.msra.mxu0 %v276
  %902 = vmatpush.msra.mxu0 %v275
  %903 = vmatpush.msra.mxu0 %v274
  %904 = vmatpush.msra.mxu0 %v273
  %905 = vmatpush.msra.mxu0 %v272
  %906 = vmatpush.msra.mxu0 %v271
  %907 = vmatpush.msra.mxu0 %v270
  %908 = vmatpush.msra.mxu0 %v269
  %909 = vmatpush.msra.mxu0 %v268
  %910 = vmatpush.msra.mxu0 %v267
  %911 = vmatpush.msra.mxu0 %v266
  %912 = vmatpush.msra.mxu0 %v265
  %913 = vmatpush.msra.mxu0 %v264
  %914 = vmatpush.msra.mxu0 %v263
  %915 = vmatpush.msra.mxu0 %v262
  %916 = vmatmul.f32.gmra.mxu0 %v570
  %v917 = vpop.f32.mrf.mxu0
  %v918 = vadd.f32 %v898, %v917
  %919 = vdwg.mxu0
  %920 = vmatpush.msra.mxu0 %v293
  %921 = vmatpush.msra.mxu0 %v292
  %922 = vmatpush.msra.mxu0 %v291
  %923 = vmatpush.msra.mxu0 %v290
  %924 = vmatpush.msra.mxu0 %v289
  %925 = vmatpush.msra.mxu0 %v288
  %926 = vmatpush.msra.mxu0 %v287
  %927 = vmatpush.msra.mxu0 %v286
  %928 = vmatpush.msra.mxu0 %v285
  %929 = vmatpush.msra.mxu0 %v284
  %930 = vmatpush.msra.mxu0 %v283
  %931 = vmatpush.msra.mxu0 %v282
  %932 = vmatpush.msra.mxu0 %v281
  %933 = vmatpush.msra.mxu0 %v280
  %934 = vmatpush.msra.mxu0 %v279
  %935 = vmatpush.msra.mxu0 %v278
  %936 = vmatmul.f32.gmra.mxu0 %v571
  %v937 = vpop.f32.mrf.mxu0
  %v938 = vadd.f32 %v918, %v937
  %939 = vdwg.mxu0
  %940 = vmatpush.msra.mxu0 %v309
  %941 = vmatpush.msra.mxu0 %v308
  %942 = vmatpush.msra.mxu0 %v307
  %943 = vmatpush.msra.mxu0 %v306
  %944 = vmatpush.msra.mxu0 %v305
  %945 = vmatpush.msra.mxu0 %v304
  %946 = vmatpush.msra.mxu0 %v303
  %947 = vmatpush.msra.mxu0 %v302
  %948 = vmatpush.msra.mxu0 %v301
  %949 = vmatpush.msra.mxu0 %v300
  %950 = vmatpush.msra.mxu0 %v299
  %951 = vmatpush.msra.mxu0 %v298
  %952 = vmatpush.msra.mxu0 %v297
  %953 = vmatpush.msra.mxu0 %v296
  %954 = vmatpush.msra.mxu0 %v295
  %955 = vmatpush.msra.mxu0 %v294
  %956 = vmatmul.f32.gmra.mxu0 %v572
  %v957 = vpop.f32.mrf.mxu0
  %v958 = vadd.f32 %v938, %v957
  %959 = vdwg.mxu0
  %960 = vmatpush.msra.mxu0 %v325
  %961 = vmatpush.msra.mxu0 %v324
  %962 = vmatpush.msra.mxu0 %v323
  %963 = vmatpush.msra.mxu0 %v322
  %964 = vmatpush.msra.mxu0 %v321
  %965 = vmatpush.msra.mxu0 %v320
  %966 = vmatpush.msra.mxu0 %v319
  %967 = vmatpush.msra.mxu0 %v318
  %968 = vmatpush.msra.mxu0 %v317
  %969 = vmatpush.msra.mxu0 %v316
  %970 = vmatpush.msra.mxu0 %v315
  %971 = vmatpush.msra.mxu0 %v314
  %972 = vmatpush.msra.mxu0 %v313
  %973 = vmatpush.msra.mxu0 %v312
  %974 = vmatpush.msra.mxu0 %v311
  %975 = vmatpush.msra.mxu0 %v310
  %976 = vmatmul.f32.gmra.mxu0 %v573
  %v977 = vpop.f32.mrf.mxu0
  %v978 = vadd.f32 %v958, %v977
  %979 = vdwg.mxu0
  %980 = vmatpush.msra.mxu0 %v341
  %981 = vmatpush.msra.mxu0 %v340
  %982 = vmatpush.msra.mxu0 %v339
  %983 = vmatpush.msra.mxu0 %v338
  %984 = vmatpush.msra.mxu0 %v337
  %985 = vmatpush.msra.mxu0 %v336
  %986 = vmatpush.msra.mxu0 %v335
  %987 = vmatpush.msra.mxu0 %v334
  %988 = vmatpush.msra.mxu0 %v333
  %989 = vmatpush.msra.mxu0 %v332
  %990 = vmatpush.msra.mxu0 %v331
  %991 = vmatpush.msra.mxu0 %v330
  %992 = vmatpush.msra.mxu0 %v329
  %993 = vmatpush.msra.mxu0 %v328
  %994 = vmatpush.msra.mxu0 %v327
  %995 = vmatpush.msra.mxu0 %v326
  %996 = vmatmul.f32.gmra.mxu0 %v574
  %v997 = vpop.f32.mrf.mxu0
  %v998 = vadd.f32 %v978, %v997
  %999 = vdwg.mxu0
  %1000 = vmatpush.msra.mxu0 %v357
  %1001 = vmatpush.msra.mxu0 %v356
  %1002 = vmatpush.msra.mxu0 %v355
  %1003 = vmatpush.msra.mxu0 %v354
  %1004 = vmatpush.msra.mxu0 %v353
  %1005 = vmatpush.msra.mxu0 %v352
  %1006 = vmatpush.msra.mxu0 %v351
  %1007 = vmatpush.msra.mxu0 %v350
  %1008 = vmatpush.msra.mxu0 %v349
  %1009 = vmatpush.msra.mxu0 %v348
  %1010 = vmatpush.msra.mxu0 %v347
  %1011 = vmatpush.msra.mxu0 %v346
  %1012 = vmatpush.msra.mxu0 %v345
  %1013 = vmatpush.msra.mxu0 %v344
  %1014 = vmatpush.msra.mxu0 %v343
  %1015 = vmatpush.msra.mxu0 %v342
  %1016 = vmatmul.f32.gmra.mxu0 %v575
  %v1017 = vpop.f32.mrf.mxu0
  %v1018 = vadd.f32 %v998, %v1017
  %1019 = vdwg.mxu0
  %1020 = vmatpush.msra.mxu0 %v373
  %1021 = vmatpush.msra.mxu0 %v372
  %1022 = vmatpush.msra.mxu0 %v371
  %1023 = vmatpush.msra.mxu0 %v370
  %1024 = vmatpush.msra.mxu0 %v369
  %1025 = vmatpush.msra.mxu0 %v368
  %1026 = vmatpush.msra.mxu0 %v367
  %1027 = vmatpush.msra.mxu0 %v366
  %1028 = vmatpush.msra.mxu0 %v365
  %1029 = vmatpush.msra.mxu0 %v364
  %1030 = vmatpush.msra.mxu0 %v363
  %1031 = vmatpush.msra.mxu0 %v362
  %1032 = vmatpush.msra.mxu0 %v361
  %1033 = vmatpush.msra.mxu0 %v360
  %1034 = vmatpush.msra.mxu0 %v359
  %1035 = vmatpush.msra.mxu0 %v358
  %1036 = vmatmul.f32.gmra.mxu0 %v576
  %v1037 = vpop.f32.mrf.mxu0
  %v1038 = vadd.f32 %v1018, %v1037
  %1039 = vdwg.mxu0
  %1040 = vmatpush.msra.mxu0 %v389
  %1041 = vmatpush.msra.mxu0 %v388
  %1042 = vmatpush.msra.mxu0 %v387
  %1043 = vmatpush.msra.mxu0 %v386
  %1044 = vmatpush.msra.mxu0 %v385
  %1045 = vmatpush.msra.mxu0 %v384
  %1046 = vmatpush.msra.mxu0 %v383
  %1047 = vmatpush.msra.mxu0 %v382
  %1048 = vmatpush.msra.mxu0 %v381
  %1049 = vmatpush.msra.mxu0 %v380
  %1050 = vmatpush.msra.mxu0 %v379
  %1051 = vmatpush.msra.mxu0 %v378
  %1052 = vmatpush.msra.mxu0 %v377
  %1053 = vmatpush.msra.mxu0 %v376
  %1054 = vmatpush.msra.mxu0 %v375
  %1055 = vmatpush.msra.mxu0 %v374
  %1056 = vmatmul.f32.gmra.mxu0 %v577
  %v1057 = vpop.f32.mrf.mxu0
  %v1058 = vadd.f32 %v1038, %v1057
  %1059 = vdwg.mxu0
  %1060 = vmatpush.msra.mxu0 %v405
  %1061 = vmatpush.msra.mxu0 %v404
  %1062 = vmatpush.msra.mxu0 %v403
  %1063 = vmatpush.msra.mxu0 %v402
  %1064 = vmatpush.msra.mxu0 %v401
  %1065 = vmatpush.msra.mxu0 %v400
  %1066 = vmatpush.msra.mxu0 %v399
  %1067 = vmatpush.msra.mxu0 %v398
  %1068 = vmatpush.msra.mxu0 %v397
  %1069 = vmatpush.msra.mxu0 %v396
  %1070 = vmatpush.msra.mxu0 %v395
  %1071 = vmatpush.msra.mxu0 %v394
  %1072 = vmatpush.msra.mxu0 %v393
  %1073 = vmatpush.msra.mxu0 %v392
  %1074 = vmatpush.msra.mxu0 %v391
  %1075 = vmatpush.msra.mxu0 %v390
  %1076 = vmatmul.f32.gmra.mxu0 %v578
  %v1077 = vpop.f32.mrf.mxu0
  %v1078 = vadd.f32 %v1058, %v1077
  %1079 = vdwg.mxu0
  %1080 = vmatpush.msra.mxu0 %v421
  %1081 = vmatpush.msra.mxu0 %v420
  %1082 = vmatpush.msra.mxu0 %v419
  %1083 = vmatpush.msra.mxu0 %v418
  %1084 = vmatpush.msra.mxu0 %v417
  %1085 = vmatpush.msra.mxu0 %v416
  %1086 = vmatpush.msra.mxu0 %v415
  %1087 = vmatpush.msra.mxu0 %v414
  %1088 = vmatpush.msra.mxu0 %v413
  %1089 = vmatpush.msra.mxu0 %v412
  %1090 = vmatpush.msra.mxu0 %v411
  %1091 = vmatpush.msra.mxu0 %v410
  %1092 = vmatpush.msra.mxu0 %v409
  %1093 = vmatpush.msra.mxu0 %v408
  %1094 = vmatpush.msra.mxu0 %v407
  %1095 = vmatpush.msra.mxu0 %v406
  %1096 = vmatmul.f32.gmra.mxu0 %v579
  %v1097 = vpop.f32.mrf.mxu0
  %v1098 = vadd.f32 %v1078, %v1097
  %1099 = vdwg.mxu0
  %1100 = vmatpush.msra.mxu0 %v437
  %1101 = vmatpush.msra.mxu0 %v436
  %1102 = vmatpush.msra.mxu0 %v435
  %1103 = vmatpush.msra.mxu0 %v434
  %1104 = vmatpush.msra.mxu0 %v433
  %1105 = vmatpush.msra.mxu0 %v432
  %1106 = vmatpush.msra.mxu0 %v431
  %1107 = vmatpush.msra.mxu0 %v430
  %1108 = vmatpush.msra.mxu0 %v429
  %1109 = vmatpush.msra.mxu0 %v428
  %1110 = vmatpush.msra.mxu0 %v427
  %1111 = vmatpush.msra.mxu0 %v426
  %1112 = vmatpush.msra.mxu0 %v425
  %1113 = vmatpush.msra.mxu0 %v424
  %1114 = vmatpush.msra.mxu0 %v423
  %1115 = vmatpush.msra.mxu0 %v422
  %1116 = vmatmul.f32.gmra.mxu0 %v580
  %v1117 = vpop.f32.mrf.mxu0
  %v1118 = vadd.f32 %v1098, %v1117
  %1119 = vdwg.mxu0
  %1120 = vmatpush.msra.mxu0 %v453
  %1121 = vmatpush.msra.mxu0 %v452
  %1122 = vmatpush.msra.mxu0 %v451
  %1123 = vmatpush.msra.mxu0 %v450
  %1124 = vmatpush.msra.mxu0 %v449
  %1125 = vmatpush.msra.mxu0 %v448
  %1126 = vmatpush.msra.mxu0 %v447
  %1127 = vmatpush.msra.mxu0 %v446
  %1128 = vmatpush.msra.mxu0 %v445
  %1129 = vmatpush.msra.mxu0 %v444
  %1130 = vmatpush.msra.mxu0 %v443
  %1131 = vmatpush.msra.mxu0 %v442
  %1132 = vmatpush.msra.mxu0 %v441
  %1133 = vmatpush.msra.mxu0 %v440
  %1134 = vmatpush.msra.mxu0 %v439
  %1135 = vmatpush.msra.mxu0 %v438
  %1136 = vmatmul.f32.gmra.mxu0 %v581
  %v1137 = vpop.f32.mrf.mxu0
  %v1138 = vadd.f32 %v1118, %v1137
  %1139 = vdwg.mxu0
  %1140 = vmatpush.msra.mxu0 %v469
  %1141 = vmatpush.msra.mxu0 %v468
  %1142 = vmatpush.msra.mxu0 %v467
  %1143 = vmatpush.msra.mxu0 %v466
  %1144 = vmatpush.msra.mxu0 %v465
  %1145 = vmatpush.msra.mxu0 %v464
  %1146 = vmatpush.msra.mxu0 %v463
  %1147 = vmatpush.msra.mxu0 %v462
  %1148 = vmatpush.msra.mxu0 %v461
  %1149 = vmatpush.msra.mxu0 %v460
  %1150 = vmatpush.msra.mxu0 %v459
  %1151 = vmatpush.msra.mxu0 %v458
  %1152 = vmatpush.msra.mxu0 %v457
  %1153 = vmatpush.msra.mxu0 %v456
  %1154 = vmatpush.msra.mxu0 %v455
  %1155 = vmatpush.msra.mxu0 %v454
  %1156 = vmatmul.f32.gmra.mxu0 %v582
  %v1157 = vpop.f32.mrf.mxu0
  %v1158 = vadd.f32 %v1138, %v1157
  %1159 = vdwg.mxu0
  %1160 = vmatpush.msra.mxu0 %v485
  %1161 = vmatpush.msra.mxu0 %v484
  %1162 = vmatpush.msra.mxu0 %v483
  %1163 = vmatpush.msra.mxu0 %v482
  %1164 = vmatpush.msra.mxu0 %v481
  %1165 = vmatpush.msra.mxu0 %v480
  %1166 = vmatpush.msra.mxu0 %v479
  %1167 = vmatpush.msra.mxu0 %v478
  %1168 = vmatpush.msra.mxu0 %v477
  %1169 = vmatpush.msra.mxu0 %v476
  %1170 = vmatpush.msra.mxu0 %v475
  %1171 = vmatpush.msra.mxu0 %v474
  %1172 = vmatpush.msra.mxu0 %v473
  %1173 = vmatpush.msra.mxu0 %v472
  %1174 = vmatpush.msra.mxu0 %v471
  %1175 = vmatpush.msra.mxu0 %v470
  %1176 = vmatmul.f32.gmra.mxu0 %v583
  %v1177 = vpop.f32.mrf.mxu0
  %v1178 = vadd.f32 %v1158, %v1177
  %1179 = vdwg.mxu0
  %1180 = vmatpush.msra.mxu0 %v501
  %1181 = vmatpush.msra.mxu0 %v500
  %1182 = vmatpush.msra.mxu0 %v499
  %1183 = vmatpush.msra.mxu0 %v498
  %1184 = vmatpush.msra.mxu0 %v497
  %1185 = vmatpush.msra.mxu0 %v496
  %1186 = vmatpush.msra.mxu0 %v495
  %1187 = vmatpush.msra.mxu0 %v494
  %1188 = vmatpush.msra.mxu0 %v493
  %1189 = vmatpush.msra.mxu0 %v492
  %1190 = vmatpush.msra.mxu0 %v491
  %1191 = vmatpush.msra.mxu0 %v490
  %1192 = vmatpush.msra.mxu0 %v489
  %1193 = vmatpush.msra.mxu0 %v488
  %1194 = vmatpush.msra.mxu0 %v487
  %1195 = vmatpush.msra.mxu0 %v486
  %1196 = vmatmul.f32.gmra.mxu0 %v584
  %v1197 = vpop.f32.mrf.mxu0
  %v1198 = vadd.f32 %v1178, %v1197
  %1199 = vdwg.mxu0
  %1200 = vmatpush.msra.mxu0 %v517
  %1201 = vmatpush.msra.mxu0 %v516
  %1202 = vmatpush.msra.mxu0 %v515
  %1203 = vmatpush.msra.mxu0 %v514
  %1204 = vmatpush.msra.mxu0 %v513
  %1205 = vmatpush.msra.mxu0 %v512
  %1206 = vmatpush.msra.mxu0 %v511
  %1207 = vmatpush.msra.mxu0 %v510
  %1208 = vmatpush.msra.mxu0 %v509
  %1209 = vmatpush.msra.mxu0 %v508
  %1210 = vmatpush.msra.mxu0 %v507
  %1211 = vmatpush.msra.mxu0 %v506
  %1212 = vmatpush.msra.mxu0 %v505
  %1213 = vmatpush.msra.mxu0 %v504
  %1214 = vmatpush.msra.mxu0 %v503
  %1215 = vmatpush.msra.mxu0 %v502
  %1216 = vmatmul.f32.gmra.mxu0 %v585
  %v1217 = vpop.f32.mrf.mxu0
  %v1218 = vadd.f32 %v1198, %v1217
  %1219 = vdwg.mxu0
  %1220 = vmatpush.msra.mxu0 %v533
  %1221 = vmatpush.msra.mxu0 %v532
  %1222 = vmatpush.msra.mxu0 %v531
  %1223 = vmatpush.msra.mxu0 %v530
  %1224 = vmatpush.msra.mxu0 %v529
  %1225 = vmatpush.msra.mxu0 %v528
  %1226 = vmatpush.msra.mxu0 %v527
  %1227 = vmatpush.msra.mxu0 %v526
  %1228 = vmatpush.msra.mxu0 %v525
  %1229 = vmatpush.msra.mxu0 %v524
  %1230 = vmatpush.msra.mxu0 %v523
  %1231 = vmatpush.msra.mxu0 %v522
  %1232 = vmatpush.msra.mxu0 %v521
  %1233 = vmatpush.msra.mxu0 %v520
  %1234 = vmatpush.msra.mxu0 %v519
  %1235 = vmatpush.msra.mxu0 %v518
  %1236 = vmatmul.f32.gmra.mxu0 %v586
  %v1237 = vpop.f32.mrf.mxu0
  %v1238 = vadd.f32 %v1218, %v1237
  %1239 = vdwg.mxu0
  %1240 = vmatpush.msra.mxu0 %v549
  %1241 = vmatpush.msra.mxu0 %v548
  %1242 = vmatpush.msra.mxu0 %v547
  %1243 = vmatpush.msra.mxu0 %v546
  %1244 = vmatpush.msra.mxu0 %v545
  %1245 = vmatpush.msra.mxu0 %v544
  %1246 = vmatpush.msra.mxu0 %v543
  %1247 = vmatpush.msra.mxu0 %v542
  %1248 = vmatpush.msra.mxu0 %v541
  %1249 = vmatpush.msra.mxu0 %v540
  %1250 = vmatpush.msra.mxu0 %v539
  %1251 = vmatpush.msra.mxu0 %v538
  %1252 = vmatpush.msra.mxu0 %v537
  %1253 = vmatpush.msra.mxu0 %v536
  %1254 = vmatpush.msra.mxu0 %v535
  %1255 = vmatpush.msra.mxu0 %v534
  %1256 = vmatmul.f32.gmra.mxu0 %v587
  %v1257 = vpop.f32.mrf.mxu0
  %v1258 = vadd.f32 %v1238, %v1257
  %1259 = vdwg.mxu0
  %1260 = vst [vmem:[%s4] sm:$0x1] %v1258
  // Predicated region
  $region18: #{edge_decoder.1} parent=0 // pred_check
    _
  $region19: #{edge_decoder.1} parent=0 // pred_check_branch
    %1262 = sbr.rel (0) target = $region21
  $region20: #{edge_decoder.1} parent=0 // pred_region
    _
  $region21: #{edge_decoder.1} parent=0 // pred_fallthru
    _
  // Predicated region
  $region22: #{edge_decoder.1} parent=0 // pred_check
    _
  $region23: #{edge_decoder.1} parent=0 // pred_check_branch
    %1264 = sbr.rel (0) target = $region25
  $region24: #{edge_decoder.1} parent=0 // pred_region
    _
  $region25: #{edge_decoder.1} parent=0 // pred_fallthru
    _

</llo_original>
